<compile_context>
chip_gen: v5e
topology: v5e:2x2
jax: 0.10.0
libtpu: 0.0.40
codegen_flags: <defaults>
</compile_context>

<pallas_src>
import functools

import jax
import jax.numpy as jnp
from jax import lax
from jax.experimental import pallas as pl
from jax.experimental.pallas import tpu as pltpu


def _round_up(x: int, m: int) -> int:
    return ((x + m - 1) // m) * m


def _qlinear_kernel(x_ref, w_ref, s_ref, b_ref, o_ref, acc_ref):
    k = pl.program_id(2)

    @pl.when(k == 0)
    def _():
        acc_ref[...] = jnp.zeros_like(acc_ref)

    # int8 -> activation dtype (exact for values in [-128, 127]); MXU NT matmul
    # contracting the last dim of both operands — no materialized transpose.
    w = w_ref[...].astype(x_ref.dtype)                               # (tn, tk)
    acc_ref[...] += lax.dot_general(
        x_ref[...], w,
        dimension_numbers=(((1,), (1,)), ((), ())),
        preferred_element_type=jnp.float32)                          # (tm, tn)

    @pl.when(k == pl.num_programs(2) - 1)
    def _():
        # Fused epilogue: per-output-channel scale + bias over the lane-dense
        # (tm, tn) accumulator, single store to the output tile.
        o_ref[...] = (acc_ref[...] * s_ref[...] + b_ref[...]).astype(o_ref.dtype)


@functools.partial(jax.jit, static_argnames=("tm", "tn", "tk"))
def quantized_linear(x, quantized_weight, weight_scale, bias=None,
                     *, tm=256, tn=512, tk=1024):
    """Pallas equivalent of:
         out = x @ (quantized_weight.float() * weight_scale).T (+ bias)
    x:                (M, K) float
    quantized_weight: (N, K) int8
    weight_scale:     (N, 1) float
    bias:             (N,) float or None
    returns:          (M, N) float32
    """
    M, K = x.shape
    N, K2 = quantized_weight.shape
    assert K == K2

    # Clamp tiles to the (hardware-rounded) problem dims, then pad to tile
    # multiples so arbitrary shapes work (no hard divisibility asserts).
    tm = min(tm, _round_up(M, 8))
    tn = min(tn, _round_up(N, 128))
    tk = min(tk, _round_up(K, 128))
    Mp, Np, Kp = _round_up(M, tm), _round_up(N, tn), _round_up(K, tk)

    x_p = x
    if (Mp, Kp) != (M, K):
        x_p = jnp.pad(x, ((0, Mp - M), (0, Kp - K)))
    w_p = quantized_weight
    if (Np, Kp) != (N, K):
        w_p = jnp.pad(quantized_weight, ((0, Np - N), (0, Kp - K)))

    s_row = weight_scale.reshape(1, N).astype(jnp.float32)           # lane-dense
    if Np != N:
        s_row = jnp.pad(s_row, ((0, 0), (0, Np - N)))
    if bias is None:
        b_row = jnp.zeros((1, Np), jnp.float32)
    else:
        b_row = bias.reshape(1, N).astype(jnp.float32)
        if Np != N:
            b_row = jnp.pad(b_row, ((0, 0), (0, Np - N)))

    grid = (Mp // tm, Np // tn, Kp // tk)

    # Advisory cost hint so XLA schedules neighbouring ops around the call well.
    cost = pl.CostEstimate(
        flops=2 * Mp * Np * Kp,
        transcendentals=0,
        bytes_accessed=(Mp * Kp * 4 + Np * Kp * 1 + Mp * Np * 4 + 2 * Np * 4),
    )

    out = pl.pallas_call(
        _qlinear_kernel,
        out_shape=jax.ShapeDtypeStruct((Mp, Np), jnp.float32),
        grid_spec=pltpu.PrefetchScalarGridSpec(
            num_scalar_prefetch=0,
            grid=grid,
            in_specs=[
                pl.BlockSpec((tm, tk), lambda i, j, k: (i, k)),   # x
                pl.BlockSpec((tn, tk), lambda i, j, k: (j, k)),   # int8 weight (N, K)
                pl.BlockSpec((1, tn), lambda i, j, k: (0, j)),    # scale row
                pl.BlockSpec((1, tn), lambda i, j, k: (0, j)),    # bias row
            ],
            out_specs=pl.BlockSpec((tm, tn), lambda i, j, k: (i, j)),
            scratch_shapes=[pltpu.VMEM((tm, tn), jnp.float32)],
        ),
        compiler_params=pltpu.CompilerParams(
            dimension_semantics=("parallel", "parallel", "arbitrary")),
        cost_estimate=cost,
    )(x_p, w_p, s_row, b_row)

    if (Mp, Np) != (M, N):
        out = out[:M, :N]
    return out


if __name__ == "__main__":
    # Small shapes consistent with the module: batch=8, in_features=256, out_features=128.
    batch, in_features, out_features = 8, 256, 128

    key = jax.random.PRNGKey(0)
    k_x, k_w, k_s, k_b = jax.random.split(key, 4)

    x = jax.random.normal(k_x, (batch, in_features), dtype=jnp.float32)

    # Deterministic synthetic "quantized" parameters (the module registers them
    # as zeros/ones buffers; fill with random values to make the test non-trivial).
    quantized_weight = jax.random.randint(
        k_w, (out_features, in_features), minval=-128, maxval=128, dtype=jnp.int32
    ).astype(jnp.int8)
    weight_scale = jax.random.uniform(
        k_s, (out_features, 1), minval=0.005, maxval=0.02, dtype=jnp.float32)
    bias = jax.random.normal(k_b, (out_features,), dtype=jnp.float32)

    # Pure-JAX reference of the PyTorch forward.
    dequant_w = quantized_weight.astype(jnp.float32) * weight_scale      # (N, K)
    ref = x @ dequant_w.T + bias[None, :]                                # (M, N)
    ref_nb = x @ dequant_w.T

    # Bias path.
    out = jax.block_until_ready(quantized_linear(x, quantized_weight, weight_scale, bias))
    assert out.shape == (batch, out_features)
    assert out.dtype == jnp.float32
    assert jnp.allclose(out, ref, atol=1e-4, rtol=1e-4)

    # No-bias path (module default bias=False).
    out_nb = jax.block_until_ready(quantized_linear(x, quantized_weight, weight_scale, None))
    assert jnp.allclose(out_nb, ref_nb, atol=1e-4, rtol=1e-4)

    # Non-divisible shapes exercise the padding path.
    x2 = jax.random.normal(k_x, (5, in_features), dtype=jnp.float32)
    out2 = jax.block_until_ready(quantized_linear(x2, quantized_weight, weight_scale, bias))
    ref2 = x2 @ dequant_w.T + bias[None, :]
    assert jnp.allclose(out2, ref2, atol=1e-4, rtol=1e-4)

    print("KERNEL_OK")
</pallas_src>

<mosaic_0001>
module attributes {stable_mosaic.version = 11 : i64} {
  func.func @_qlinear_kernel(%arg0: i32, %arg1: i32, %arg2: i32, %arg3: memref<8x256xf32, #tpu.memory_space<vmem>>, %arg4: memref<128x256xi8, #tpu.memory_space<vmem>>, %arg5: memref<1x128xf32, #tpu.memory_space<vmem>>, %arg6: memref<1x128xf32, #tpu.memory_space<vmem>>, %arg7: memref<8x128xf32, #tpu.memory_space<vmem>>, %arg8: memref<8x128xf32, #tpu.memory_space<vmem>>) attributes {dimension_semantics = [#tpu.dimension_semantics<parallel>, #tpu.dimension_semantics<parallel>, #tpu.dimension_semantics<arbitrary>], iteration_bounds = array<i64: 1, 1, 1>, scalar_prefetch = 0 : i64, scratch_operands = 1 : i64, tpu.core_type = #tpu.core_type<tc>, window_params = [{transform_indices = @transform_0, window_bounds = array<i64: 8, 256>}, {transform_indices = @transform_1, window_bounds = array<i64: 128, 256>}, {transform_indices = @transform_2, window_bounds = array<i64: 1, 128>}, {transform_indices = @transform_3, window_bounds = array<i64: 1, 128>}, {transform_indices = @transform_4, window_bounds = array<i64: 8, 128>}]} {
    %c0_i32 = arith.constant 0 : i32
    %0 = arith.cmpi eq, %arg2, %c0_i32 : i32
    %1 = arith.extui %0 : i1 to i32
    %c0_i32_0 = arith.constant 0 : i32
    %2 = arith.cmpi ne, %1, %c0_i32_0 : i32
    scf.if %2 {
      %cst_10 = arith.constant 0.000000e+00 : f32
      %13 = vector.broadcast %cst_10 : f32 to vector<8x128xf32>
      %c0_11 = arith.constant 0 : index
      %c0_12 = arith.constant 0 : index
      %14 = vector.load %arg8[%c0_11, %c0_12] : memref<8x128xf32, #tpu.memory_space<vmem>>, vector<8x128xf32>
      tpu.vector_store %arg8[%c0_11, %c0_12], %13 {strides = array<i32>} : memref<8x128xf32, #tpu.memory_space<vmem>>, vector<8x128xf32>,
    } else {
    }
    %c0 = arith.constant 0 : index
    %c0_1 = arith.constant 0 : index
    %3 = vector.load %arg4[%c0, %c0_1] : memref<128x256xi8, #tpu.memory_space<vmem>>, vector<128x256xi8>
    %4 = arith.sitofp %3 : vector<128x256xi8> to vector<128x256xf32>
    %c0_2 = arith.constant 0 : index
    %c0_3 = arith.constant 0 : index
    %5 = vector.load %arg8[%c0_2, %c0_3] : memref<8x128xf32, #tpu.memory_space<vmem>>, vector<8x128xf32>
    %c0_4 = arith.constant 0 : index
    %c0_5 = arith.constant 0 : index
    %6 = vector.load %arg3[%c0_4, %c0_5] : memref<8x256xf32, #tpu.memory_space<vmem>>, vector<8x256xf32>
    %cst = arith.constant dense<0.000000e+00> : vector<8x128xf32>
    %7 = tpu.matmul %6, %4, %cst {dimension_numbers = #tpu.dot_dimension_numbers<[1], [1], [0], [0], [0, 0, 1, 0], [], []>} : vector<8x256xf32>, vector<128x256xf32>, vector<8x128xf32> -> vector<8x128xf32>
    %8 = arith.addf %5, %7 : vector<8x128xf32>
    %c0_6 = arith.constant 0 : index
    %c0_7 = arith.constant 0 : index
    %9 = vector.load %arg8[%c0_6, %c0_7] : memref<8x128xf32, #tpu.memory_space<vmem>>, vector<8x128xf32>
    tpu.vector_store %arg8[%c0_6, %c0_7], %8 {strides = array<i32>} : memref<8x128xf32, #tpu.memory_space<vmem>>, vector<8x128xf32>,
    %c0_i32_8 = arith.constant 0 : i32
    %10 = arith.cmpi eq, %arg2, %c0_i32_8 : i32
    %11 = arith.extui %10 : i1 to i32
    %c0_i32_9 = arith.constant 0 : i32
    %12 = arith.cmpi ne, %11, %c0_i32_9 : i32
    scf.if %12 {
      %c0_10 = arith.constant 0 : index
      %c0_11 = arith.constant 0 : index
      %13 = vector.load %arg8[%c0_10, %c0_11] : memref<8x128xf32, #tpu.memory_space<vmem>>, vector<8x128xf32>
      %c0_12 = arith.constant 0 : index
      %c0_13 = arith.constant 0 : index
      %14 = vector.load %arg5[%c0_12, %c0_13] : memref<1x128xf32, #tpu.memory_space<vmem>>, vector<1x128xf32>
      %15 = vector.broadcast %14 : vector<1x128xf32> to vector<8x128xf32>
      %16 = arith.mulf %13, %15 : vector<8x128xf32>
      %c0_14 = arith.constant 0 : index
      %c0_15 = arith.constant 0 : index
      %17 = vector.load %arg6[%c0_14, %c0_15] : memref<1x128xf32, #tpu.memory_space<vmem>>, vector<1x128xf32>
      %18 = vector.broadcast %17 : vector<1x128xf32> to vector<8x128xf32>
      %19 = arith.addf %16, %18 : vector<8x128xf32>
      %c0_16 = arith.constant 0 : index
      %c0_17 = arith.constant 0 : index
      %20 = vector.load %arg7[%c0_16, %c0_17] : memref<8x128xf32, #tpu.memory_space<vmem>>, vector<8x128xf32>
      tpu.vector_store %arg7[%c0_16, %c0_17], %19 {strides = array<i32>} : memref<8x128xf32, #tpu.memory_space<vmem>>, vector<8x128xf32>,
    } else {
    }
    return
  }
  func.func @transform_0(%arg0: i32, %arg1: i32, %arg2: i32) -> (i32, i32) {
    %c0_i32 = arith.constant 0 : i32
    return %arg0, %arg2 : i32, i32
  }
  func.func @transform_1(%arg0: i32, %arg1: i32, %arg2: i32) -> (i32, i32) {
    %c0_i32 = arith.constant 0 : i32
    return %arg1, %arg2 : i32, i32
  }
  func.func @transform_2(%arg0: i32, %arg1: i32, %arg2: i32) -> (i32, i32) {
    %c0_i32 = arith.constant 0 : i32
    %c0_i32_0 = arith.constant 0 : i32
    return %c0_i32, %arg1 : i32, i32
  }
  func.func @transform_3(%arg0: i32, %arg1: i32, %arg2: i32) -> (i32, i32) {
    %c0_i32 = arith.constant 0 : i32
    %c0_i32_0 = arith.constant 0 : i32
    return %c0_i32, %arg1 : i32, i32
  }
  func.func @transform_4(%arg0: i32, %arg1: i32, %arg2: i32) -> (i32, i32) {
    %c0_i32 = arith.constant 0 : i32
    return %arg0, %arg1 : i32, i32
  }
}

</mosaic_0001>

<llo_original>
// kernel: quantized_linear.1
$region0: #{quantized_linear.1}
  #allocation0 [shape = 'u32[]', space=smem, size = 0x4, offset = 0x4, fixed_abs, tag = 'smem constant byte address 0x4 - core index']
  #allocation1 [shape = 'u32[72,128]{1,0:T(1,128)}', space=vmem, size = 0x9000, scoped, tag = 'internal scratch']
  #allocation2 [shape = 'f32[8,128]{1,0:T(8,128)}', space=vmem, size = 0x1000, scoped, tag = 'scratch operand']
  %s0 = inlined_call_operand.hbm [shape: f32[8,256], index: 0, kind: input, shape index: {}]
  %s1 = inlined_call_operand.hbm [shape: s8[128,256], index: 1, kind: input, shape index: {}]
  %s2 = inlined_call_operand.vmem [shape: f32[1,128], index: 2, kind: input, shape index: {}]
  %s3 = inlined_call_operand.vmem [shape: f32[1,128], index: 3, kind: input, shape index: {}]
  %s4 = inlined_call_operand.hbm [shape: f32[8,128], index: 4, kind: output, shape index: {}]
  %s5 = sld [smem:[#allocation0]]
  $region42: #{quantized_linear.1} parent=0
    _
  %s7 = ssub.s32 1, %s5
  %s8 = scalar_select 0, %s7, %s5
  $region1: #{quantized_linear.1} parent=0
    #allocation3 [shape = 'u8[8192]{0}', space=vmem, size = 0x2000, scoped, tag = 'input window, operand 0, single buffered']
    #allocation4 [shape = 's32[1]{0}', space=sflag, size = 0x4, scoped, tag = 'scoped memory for quantized_linear.1']
    #allocation5 [shape = 's32[1]{0}', space=sflag, size = 0x4, scoped, tag = 'scoped memory for quantized_linear.1']
    #allocation6 [shape = 'u8[32768]{0}', space=vmem, size = 0x8000, scoped, tag = 'input window, operand 1, single buffered']
    #allocation7 [shape = 's32[1]{0}', space=sflag, size = 0x4, scoped, tag = 'scoped memory for quantized_linear.1']
    #allocation8 [shape = 'u8[4096]{0}', space=vmem, size = 0x1000, scoped, tag = 'output window, operand 0, single buffered']
    %9 = vsyncpa [#allocation4], 0
    %10 = vsyncpa [#allocation7], 0
    %11 = vsyncpa [#allocation5], 0
    // Predicated region
    $region2: #{quantized_linear.1} parent=1 // pred_check
      _
    $region3: #{quantized_linear.1} parent=1 // pred_check_branch
      %13 = sbr.rel (0) target = $region5
    $region4: #{quantized_linear.1} parent=1 // pred_region
      %15 = vsyncadd [#allocation4], 0
      %s17 = sshll.u32 %s0, 4
      %s18 = int_to_ptr.hbm [resolvable:$true] %s17
      %s19 = sshll.u32 [#allocation3], 4
      %s20 = int_to_ptr.vmem [resolvable:$true] %s19
      %22 = dma.hbm_to_vmem [thread:$0]  %s18, 256, %s20, [#allocation4]
    $region5: #{quantized_linear.1} parent=1 // pred_fallthru
      _
    // Predicated region
    $region6: #{quantized_linear.1} parent=1 // pred_check
      _
    $region7: #{quantized_linear.1} parent=1 // pred_check_branch
      %24 = sbr.rel (0) target = $region9
    $region8: #{quantized_linear.1} parent=1 // pred_region
      %26 = vsyncadd [#allocation7], 0
      %s27 = sshll.u32 %s1, 4
      %s28 = int_to_ptr.hbm [resolvable:$true] %s27
      %s29 = sshll.u32 [#allocation6], 4
      %s30 = int_to_ptr.vmem [resolvable:$true] %s29
      %35 = dma.hbm_to_vmem [thread:$0]  %s28, 1024, %s30, [#allocation7], 256, 256, 16
    $region9: #{quantized_linear.1} parent=1 // pred_fallthru
      _
    // Predicated region
    $region10: #{quantized_linear.1} parent=1 // pred_check
      _
    $region11: #{quantized_linear.1} parent=1 // pred_check_branch
      %37 = sbr.rel (0) target = $region13
    $region12: #{quantized_linear.1} parent=1 // pred_region
      _
    $region13: #{quantized_linear.1} parent=1 // pred_fallthru
      _
    // Predicated region
    $region14: #{quantized_linear.1} parent=1 // pred_check
      _
    $region15: #{quantized_linear.1} parent=1 // pred_check_branch
      %39 = sbr.rel (0) target = $region17
    $region16: #{quantized_linear.1} parent=1 // pred_region
      _
    $region17: #{quantized_linear.1} parent=1 // pred_fallthru
      _
    // Predicated region
    $region18: #{quantized_linear.1} parent=1 // pred_check
      _
    $region19: #{quantized_linear.1} parent=1 // pred_check_branch
      %41 = sbr.rel (0) target = $region21
    $region20: #{quantized_linear.1} parent=1 // pred_region
      %43 = dma.done [#allocation4], 256
    $region21: #{quantized_linear.1} parent=1 // pred_fallthru
      _
    // Predicated region
    $region22: #{quantized_linear.1} parent=1 // pred_check
      _
    $region23: #{quantized_linear.1} parent=1 // pred_check_branch
      %45 = sbr.rel (0) target = $region25
    $region24: #{quantized_linear.1} parent=1 // pred_region
      %47 = dma.done [#allocation7], 1024
    $region25: #{quantized_linear.1} parent=1 // pred_fallthru
      _
    %p48 = scmp.eq.s32.totalorder 0, 0
    // Predicated region
    $region26: #{quantized_linear.1} parent=1 // pred_check
      %p49 = pneg %p48
    $region27: #{quantized_linear.1} parent=1 // pred_check_branch
      %51 = sbr.rel (%p49) target = $region29
    $region28: #{quantized_linear.1} parent=1 // pred_region
      %52 = vst [vmem:[#allocation2] sm:$0xff] 0.0
    $region29: #{quantized_linear.1} parent=1 // pred_fallthru
      _
    %v53 = vld [vmem:[#allocation6] sm:$0xff]
    %v54 = vld [vmem:[#allocation6 + $0x8] sm:$0xff]
    %v55 = vld [vmem:[#allocation6 + $0x10] sm:$0xff]
    %v56 = vld [vmem:[#allocation6 + $0x18] sm:$0xff]
    %v57 = vld [vmem:[#allocation6 + $0x20] sm:$0xff]
    %v58 = vld [vmem:[#allocation6 + $0x28] sm:$0xff]
    %v59 = vld [vmem:[#allocation6 + $0x30] sm:$0xff]
    %v60 = vld [vmem:[#allocation6 + $0x38] sm:$0xff]
    %v61 = vunpack.c.0.s8 %v53
    %v62 = vunpack.c.0.s8 %v54
    %v63 = vunpack.c.1.s8 %v53
    %v64 = vunpack.c.1.s8 %v54
    %v65 = vunpack.c.2.s8 %v53
    %v66 = vunpack.c.2.s8 %v54
    %v67 = vunpack.c.3.s8 %v53
    %v68 = vunpack.c.3.s8 %v54
    %v69 = vunpack.c.0.s8 %v55
    %v70 = vunpack.c.0.s8 %v56
    %v71 = vunpack.c.1.s8 %v55
    %v72 = vunpack.c.1.s8 %v56
    %v73 = vunpack.c.2.s8 %v55
    %v74 = vunpack.c.2.s8 %v56
    %v75 = vunpack.c.3.s8 %v55
    %v76 = vunpack.c.3.s8 %v56
    %v77 = vunpack.c.0.s8 %v57
    %v78 = vunpack.c.0.s8 %v58
    %v79 = vunpack.c.1.s8 %v57
    %v80 = vunpack.c.1.s8 %v58
    %v81 = vunpack.c.2.s8 %v57
    %v82 = vunpack.c.2.s8 %v58
    %v83 = vunpack.c.3.s8 %v57
    %v84 = vunpack.c.3.s8 %v58
    %v85 = vunpack.c.0.s8 %v59
    %v86 = vunpack.c.0.s8 %v60
    %v87 = vunpack.c.1.s8 %v59
    %v88 = vunpack.c.1.s8 %v60
    %v89 = vunpack.c.2.s8 %v59
    %v90 = vunpack.c.2.s8 %v60
    %v91 = vunpack.c.3.s8 %v59
    %v92 = vunpack.c.3.s8 %v60
    %v93 = vcvt.s32.f32 %v61
    %v94 = vcvt.s32.f32 %v62
    %v95 = vcvt.s32.f32 %v63
    %v96 = vcvt.s32.f32 %v64
    %v97 = vcvt.s32.f32 %v65
    %v98 = vcvt.s32.f32 %v66
    %v99 = vcvt.s32.f32 %v67
    %v100 = vcvt.s32.f32 %v68
    %v101 = vcvt.s32.f32 %v69
    %v102 = vcvt.s32.f32 %v70
    %v103 = vcvt.s32.f32 %v71
    %v104 = vcvt.s32.f32 %v72
    %v105 = vcvt.s32.f32 %v73
    %v106 = vcvt.s32.f32 %v74
    %v107 = vcvt.s32.f32 %v75
    %v108 = vcvt.s32.f32 %v76
    %v109 = vcvt.s32.f32 %v77
    %v110 = vcvt.s32.f32 %v78
    %v111 = vcvt.s32.f32 %v79
    %v112 = vcvt.s32.f32 %v80
    %v113 = vcvt.s32.f32 %v81
    %v114 = vcvt.s32.f32 %v82
    %v115 = vcvt.s32.f32 %v83
    %v116 = vcvt.s32.f32 %v84
    %v117 = vcvt.s32.f32 %v85
    %v118 = vcvt.s32.f32 %v86
    %v119 = vcvt.s32.f32 %v87
    %v120 = vcvt.s32.f32 %v88
    %v121 = vcvt.s32.f32 %v89
    %v122 = vcvt.s32.f32 %v90
    %v123 = vcvt.s32.f32 %v91
    %v124 = vcvt.s32.f32 %v92
    %v125 = vld [vmem:[#allocation2] sm:$0xff]
    %v126 = vld [vmem:[#allocation3] sm:$0xff]
    %v127 = vld [vmem:[#allocation3 + $0x8] sm:$0xff]
    %128 = vmatpush.xpose.msra.mxu0 %v123
    %129 = vmatpush.xpose.msra.mxu0 %v121
    %130 = vmatpush.xpose.msra.mxu0 %v119
    %131 = vmatpush.xpose.msra.mxu0 %v117
    %132 = vmatpush.xpose.msra.mxu0 %v115
    %133 = vmatpush.xpose.msra.mxu0 %v113
    %134 = vmatpush.xpose.msra.mxu0 %v111
    %135 = vmatpush.xpose.msra.mxu0 %v109
    %136 = vmatpush.xpose.msra.mxu0 %v107
    %137 = vmatpush.xpose.msra.mxu0 %v105
    %138 = vmatpush.xpose.msra.mxu0 %v103
    %139 = vmatpush.xpose.msra.mxu0 %v101
    %140 = vmatpush.xpose.msra.mxu0 %v99
    %141 = vmatpush.xpose.msra.mxu0 %v97
    %142 = vmatpush.xpose.msra.mxu0 %v95
    %143 = vmatpush.xpose.msra.mxu0 %v93
    %144 = vmatmul.f32.gmra.mxu0 %v126
    %v145 = vpop.f32.mrf.mxu0
    %v146 = vadd.f32 0.0, %v145
    %147 = vdwg.mxu0
    %148 = vmatpush.xpose.msra.mxu0 %v124
    %149 = vmatpush.xpose.msra.mxu0 %v122
    %150 = vmatpush.xpose.msra.mxu0 %v120
    %151 = vmatpush.xpose.msra.mxu0 %v118
    %152 = vmatpush.xpose.msra.mxu0 %v116
    %153 = vmatpush.xpose.msra.mxu0 %v114
    %154 = vmatpush.xpose.msra.mxu0 %v112
    %155 = vmatpush.xpose.msra.mxu0 %v110
    %156 = vmatpush.xpose.msra.mxu0 %v108
    %157 = vmatpush.xpose.msra.mxu0 %v106
    %158 = vmatpush.xpose.msra.mxu0 %v104
    %159 = vmatpush.xpose.msra.mxu0 %v102
    %160 = vmatpush.xpose.msra.mxu0 %v100
    %161 = vmatpush.xpose.msra.mxu0 %v98
    %162 = vmatpush.xpose.msra.mxu0 %v96
    %163 = vmatpush.xpose.msra.mxu0 %v94
    %164 = vmatmul.f32.gmra.mxu0 %v127
    %v165 = vpop.f32.mrf.mxu0
    %v166 = vadd.f32 %v146, %v165
    %167 = vdwg.mxu0
    %v168 = vadd.f32 %v125, %v166
    %169 = vst [vmem:[#allocation2] sm:$0xff] %v168
    // Predicated region
    $region30: #{quantized_linear.1} parent=1 // pred_check
      %p170 = pneg %p48
    $region31: #{quantized_linear.1} parent=1 // pred_check_branch
      %172 = sbr.rel (%p170) target = $region33
    $region32: #{quantized_linear.1} parent=1 // pred_region
      %v173 = vld [vmem:[#allocation2] sm:$0xff]
      %v174 = vld [vmem:[%s2] sm:$0x1]
      %v176 = vperm.slane %v174, 0
      %v178 = vmul.f32 %v173, %v176
      %v179 = vld [vmem:[%s3] sm:$0x1]
      %v181 = vperm.slane %v179, 0
      %v183 = vadd.f32 %v178, %v181
      %184 = vst [vmem:[#allocation8] sm:$0xff] %v183
    $region33: #{quantized_linear.1} parent=1 // pred_fallthru
      _
    // Predicated region
    $region34: #{quantized_linear.1} parent=1 // pred_check
      _
    $region35: #{quantized_linear.1} parent=1 // pred_check_branch
      %186 = sbr.rel (0) target = $region37
    $region36: #{quantized_linear.1} parent=1 // pred_region
      %188 = vsyncadd [#allocation5], 0
      %s190 = sshll.u32 [#allocation8], 4
      %s191 = int_to_ptr.vmem [resolvable:$true] %s190
      %s192 = sshll.u32 %s4, 4
      %s193 = int_to_ptr.hbm [resolvable:$true] %s192
      %195 = dma.vmem_to_hbm [thread:$0]  %s191, 128, %s193, [#allocation5]
    $region37: #{quantized_linear.1} parent=1 // pred_fallthru
      _
    // Predicated region
    $region38: #{quantized_linear.1} parent=1 // pred_check
      _
    $region39: #{quantized_linear.1} parent=1 // pred_check_branch
      %197 = sbr.rel (0) target = $region41
    $region40: #{quantized_linear.1} parent=1 // pred_region
      %199 = dma.done [#allocation5], 128
    $region41: #{quantized_linear.1} parent=1 // pred_fallthru
      _
    %200 = vsyncpa [#allocation4], 1
    %201 = vsyncpa [#allocation7], 1
    %202 = vsyncpa [#allocation5], 1

</llo_original>
